<compile_context>
chip_gen: v5e
topology: v5e:2x2
jax: 0.10.0
libtpu: 0.0.40
codegen_flags: <defaults>
</compile_context>

<pallas_src>
import math

import jax
import jax.numpy as jnp
from jax.experimental import pallas as pl
from jax.experimental.pallas import tpu as pltpu


# ---------------- parameter setup (deterministic, matches torch __init__) ----

def make_pe_table(max_len: int, d_model: int, dtype=jnp.float32):
    """Sinusoidal table identical to the torch buffer: shape (max_len, 1, d_model)."""
    position = jnp.arange(max_len, dtype=jnp.float32)[:, None]              # (L, 1)
    div_term = jnp.exp(
        jnp.arange(0, d_model, 2, dtype=jnp.float32)
        * (-math.log(10000.0) / d_model))                                   # (D/2,)
    ang = position * div_term                                               # (L, D/2)
    pe = jnp.zeros((max_len, d_model), dtype=jnp.float32)
    pe = pe.at[:, 0::2].set(jnp.sin(ang))
    pe = pe.at[:, 1::2].set(jnp.cos(ang))
    return pe[:, None, :].astype(dtype)                                     # (L, 1, D)


# ---------------- Pallas kernels ----------------------------------------------

def _add_pe_kernel(x_ref, pe_ref, o_ref):
    # Eval mode: dropout is identity -> fused broadcast add only.
    o_ref[...] = x_ref[...] + pe_ref[...]


def _add_pe_dropout_kernel(x_ref, pe_ref, keep_ref, o_ref):
    # Training mode: inverted dropout. keep_ref holds 0 or 1/(1-p) in x.dtype,
    # so one VPU multiply applies both the mask and the survivor scaling.
    o_ref[...] = (x_ref[...] + pe_ref[...]) * keep_ref[...]


# ---------------- layout / tiling helpers -------------------------------------

_MAX_LANES = 512               # lane width of the flattened slab (multiple of 128)
_TARGET_TILE_BYTES = 1 << 20   # ~1 MiB/buffer: with double-buffered x/pe/out(+mask)
                               # that is <= ~8 MiB of VMEM, safe even on v7x (64 MiB).


def _pick_lanes(total_elems: int, d: int) -> int:
    """Last dim of the 2-D slab: a multiple of 128 whenever possible."""
    if total_elems % 128 == 0:
        lanes = 128
        while lanes < _MAX_LANES and total_elems % (lanes * 2) == 0:
            lanes *= 2
        return lanes
    # Fallback for odd tiny shapes: keep D as the (full-extent) last dim.
    return d


def _pick_row_tile(rows: int, lanes: int, itemsize: int) -> int:
    """Largest row tile that divides rows, is a multiple of 8, stays under the
    per-buffer byte target, and leaves >=4 grid steps for pipelining when the
    input is large enough."""
    max_rows = max(8, _TARGET_TILE_BYTES // max(1, lanes * itemsize))
    if rows <= max_rows:
        return rows                        # single block covers everything
    max_rows = max(8, min(max_rows, pl.cdiv(rows, 4)))
    t = (max_rows // 8) * 8
    while t >= 8:
        if rows % t == 0:
            return t
        t -= 8
    return rows                            # no clean divisor: fall back to 1 block


# ---------------- wrapper ------------------------------------------------------

def positional_encoding(x, pe_full, *, dropout_p=0.2, training=False,
                        rng_key=None):
    """x: (S, B, D). pe_full: (max_len, 1, D). Returns dropout(x + pe[:S])."""
    S, B, D = x.shape
    total = S * B * D

    # pe[:S], cast to x.dtype and broadcast over batch once in the wrapper
    # (layout plumbing, not compute), then flatten everything to a lane-dense
    # 2-D slab so the kernel streams full (8,128) vregs and uses unmasked
    # full-lane stores.
    pe_b = jnp.broadcast_to(pe_full[:S].astype(x.dtype), (S, B, D))
    lanes = _pick_lanes(total, D)
    rows = total // lanes
    x2 = x.reshape(rows, lanes)
    pe2 = pe_b.reshape(rows, lanes)

    tr = _pick_row_tile(rows, lanes, x.dtype.itemsize)
    grid = (rows // tr,)
    spec = pl.BlockSpec((tr, lanes), lambda i: (i, 0))
    out_shape = jax.ShapeDtypeStruct((rows, lanes), x.dtype)
    cparams = pltpu.CompilerParams(dimension_semantics=("parallel",))

    if (not training) or dropout_p == 0.0:
        y2 = pl.pallas_call(
            _add_pe_kernel,
            grid=grid,
            in_specs=[spec, spec],
            out_specs=spec,
            out_shape=out_shape,
            compiler_params=cparams,
        )(x2, pe2)
        return y2.reshape(S, B, D)

    if dropout_p >= 1.0:                   # nn.Dropout(p=1) zeroes everything
        return jnp.zeros((S, B, D), x.dtype)

    if rng_key is None:
        rng_key = jax.random.PRNGKey(0)
    keep_scaled = (
        jax.random.bernoulli(rng_key, 1.0 - dropout_p, (rows, lanes))
        .astype(x.dtype) * jnp.asarray(1.0 / (1.0 - dropout_p), x.dtype))

    y2 = pl.pallas_call(
        _add_pe_dropout_kernel,
        grid=grid,
        in_specs=[spec, spec, spec],
        out_specs=spec,
        out_shape=out_shape,
        compiler_params=cparams,
    )(x2, pe2, keep_scaled)
    return y2.reshape(S, B, D)


if __name__ == "__main__":
    key = jax.random.PRNGKey(0)
    S, B, D = 8, 2, 32            # seq=8, batch=2, d_model=32
    MAX_LEN = 2000

    kx, kd = jax.random.split(key)
    x = jax.random.normal(kx, (S, B, D), dtype=jnp.float32)
    pe_full = make_pe_table(MAX_LEN, D)
    ref = x + pe_full[:S]

    # Eval-mode forward (dropout = identity): must match x + pe exactly.
    y = jax.block_until_ready(
        positional_encoding(x, pe_full, dropout_p=0.2, training=False))
    assert y.shape == (S, B, D)
    assert jnp.allclose(y, ref, atol=1e-6), "eval-mode mismatch vs reference"

    # Training-mode forward (fused add + inverted dropout inside the kernel).
    p = 0.2
    y_tr = jax.block_until_ready(
        positional_encoding(x, pe_full, dropout_p=p, training=True, rng_key=kd))
    assert y_tr.shape == (S, B, D)
    # Surviving entries equal (x + pe) / (1 - p); dropped entries are zero.
    kept = y_tr != 0
    assert jnp.allclose(
        jnp.where(kept, y_tr, 0.0),
        jnp.where(kept, ref / (1.0 - p), 0.0), atol=1e-5)

    print("KERNEL_OK")
</pallas_src>

<mosaic_0001>
module attributes {stable_mosaic.version = 11 : i64} {
  func.func @_add_pe_kernel(%arg0: i32, %arg1: memref<1x512xf32, #tpu.memory_space<vmem>>, %arg2: memref<1x512xf32, #tpu.memory_space<vmem>>, %arg3: memref<1x512xf32, #tpu.memory_space<vmem>>) attributes {dimension_semantics = [#tpu.dimension_semantics<parallel>], iteration_bounds = array<i64: 1>, scalar_prefetch = 0 : i64, scratch_operands = 0 : i64, tpu.core_type = #tpu.core_type<tc>, window_params = [{transform_indices = @transform_0, window_bounds = array<i64: 1, 512>}, {transform_indices = @transform_1, window_bounds = array<i64: 1, 512>}, {transform_indices = @transform_2, window_bounds = array<i64: 1, 512>}]} {
    %c0 = arith.constant 0 : index
    %c0_0 = arith.constant 0 : index
    %0 = vector.load %arg1[%c0, %c0_0] : memref<1x512xf32, #tpu.memory_space<vmem>>, vector<1x512xf32>
    %c0_1 = arith.constant 0 : index
    %c0_2 = arith.constant 0 : index
    %1 = vector.load %arg2[%c0_1, %c0_2] : memref<1x512xf32, #tpu.memory_space<vmem>>, vector<1x512xf32>
    %2 = arith.addf %0, %1 : vector<1x512xf32>
    %c0_3 = arith.constant 0 : index
    %c0_4 = arith.constant 0 : index
    %3 = vector.load %arg3[%c0_3, %c0_4] : memref<1x512xf32, #tpu.memory_space<vmem>>, vector<1x512xf32>
    tpu.vector_store %arg3[%c0_3, %c0_4], %2 {strides = array<i32>} : memref<1x512xf32, #tpu.memory_space<vmem>>, vector<1x512xf32>,
    return
  }
  func.func @transform_0(%arg0: i32) -> (i32, i32) {
    %c0_i32 = arith.constant 0 : i32
    %c0_i32_0 = arith.constant 0 : i32
    return %arg0, %c0_i32 : i32, i32
  }
  func.func @transform_1(%arg0: i32) -> (i32, i32) {
    %c0_i32 = arith.constant 0 : i32
    %c0_i32_0 = arith.constant 0 : i32
    return %arg0, %c0_i32 : i32, i32
  }
  func.func @transform_2(%arg0: i32) -> (i32, i32) {
    %c0_i32 = arith.constant 0 : i32
    %c0_i32_0 = arith.constant 0 : i32
    return %arg0, %c0_i32 : i32, i32
  }
}

</mosaic_0001>

<llo_original>
// kernel: tpu_custom_call.1
$region0: #{tpu_custom_call.1}
  #allocation0 [shape = 'u32[]', space=smem, size = 0x4, offset = 0x4, fixed_abs, tag = 'smem constant byte address 0x4 - core index']
  #allocation1 [shape = 'u32[72,128]{1,0:T(1,128)}', space=vmem, size = 0x9000, scoped, tag = 'internal scratch']
  %s0 = inlined_call_operand.hbm [shape: f32[1,512], index: 0, kind: input, shape index: {}]
  %s1 = inlined_call_operand.hbm [shape: f32[1,512], index: 1, kind: input, shape index: {}]
  %s2 = inlined_call_operand.hbm [shape: f32[1,512], index: 2, kind: output, shape index: {}]
  %s3 = sld [smem:[#allocation0]]
  $region26: #{tpu_custom_call.1} parent=0
    _
  %s5 = ssub.s32 1, %s3
  %s6 = scalar_select 0, %s5, %s3
  $region1: #{tpu_custom_call.1} parent=0
    #allocation2 [shape = 'u8[2048]{0}', space=vmem, size = 0x800, scoped, tag = 'input window, operand 0, single buffered']
    #allocation3 [shape = 's32[1]{0}', space=sflag, size = 0x4, scoped, tag = 'scoped memory for tpu_custom_call.1']
    #allocation4 [shape = 's32[1]{0}', space=sflag, size = 0x4, scoped, tag = 'scoped memory for tpu_custom_call.1']
    #allocation5 [shape = 'u8[2048]{0}', space=vmem, size = 0x800, scoped, tag = 'input window, operand 1, single buffered']
    #allocation6 [shape = 's32[1]{0}', space=sflag, size = 0x4, scoped, tag = 'scoped memory for tpu_custom_call.1']
    #allocation7 [shape = 'u8[2048]{0}', space=vmem, size = 0x800, scoped, tag = 'output window, operand 0, single buffered']
    %7 = vsyncpa [#allocation3], 0
    %8 = vsyncpa [#allocation6], 0
    %9 = vsyncpa [#allocation4], 0
    // Predicated region
    $region2: #{tpu_custom_call.1} parent=1 // pred_check
      _
    $region3: #{tpu_custom_call.1} parent=1 // pred_check_branch
      %11 = sbr.rel (0) target = $region5
    $region4: #{tpu_custom_call.1} parent=1 // pred_region
      %13 = vsyncadd [#allocation3], 0
      %s15 = sshll.u32 %s0, 4
      %s16 = int_to_ptr.hbm [resolvable:$true] %s15
      %s17 = sshll.u32 [#allocation2], 4
      %s18 = int_to_ptr.vmem [resolvable:$true] %s17
      %20 = dma.hbm_to_vmem [thread:$0]  %s16, 64, %s18, [#allocation3]
    $region5: #{tpu_custom_call.1} parent=1 // pred_fallthru
      _
    // Predicated region
    $region6: #{tpu_custom_call.1} parent=1 // pred_check
      _
    $region7: #{tpu_custom_call.1} parent=1 // pred_check_branch
      %22 = sbr.rel (0) target = $region9
    $region8: #{tpu_custom_call.1} parent=1 // pred_region
      %24 = vsyncadd [#allocation6], 0
      %s26 = sshll.u32 %s1, 4
      %s27 = int_to_ptr.hbm [resolvable:$true] %s26
      %s28 = sshll.u32 [#allocation5], 4
      %s29 = int_to_ptr.vmem [resolvable:$true] %s28
      %31 = dma.hbm_to_vmem [thread:$0]  %s27, 64, %s29, [#allocation6]
    $region9: #{tpu_custom_call.1} parent=1 // pred_fallthru
      _
    // Predicated region
    $region10: #{tpu_custom_call.1} parent=1 // pred_check
      _
    $region11: #{tpu_custom_call.1} parent=1 // pred_check_branch
      %33 = sbr.rel (0) target = $region13
    $region12: #{tpu_custom_call.1} parent=1 // pred_region
      %35 = dma.done [#allocation3], 64
    $region13: #{tpu_custom_call.1} parent=1 // pred_fallthru
      _
    // Predicated region
    $region14: #{tpu_custom_call.1} parent=1 // pred_check
      _
    $region15: #{tpu_custom_call.1} parent=1 // pred_check_branch
      %37 = sbr.rel (0) target = $region17
    $region16: #{tpu_custom_call.1} parent=1 // pred_region
      %39 = dma.done [#allocation6], 64
    $region17: #{tpu_custom_call.1} parent=1 // pred_fallthru
      _
    %v40 = vld [vmem:[#allocation2] sm:$0xf]
    %v41 = vld [vmem:[#allocation5] sm:$0xf]
    %v42 = vadd.f32 %v40, %v41
    %v43 = vlaneseq
    %vm44 = vcmp.ge.s32.totalorder %v43, 0
    %vm45 = vcmp.lt.s32.totalorder %v43, 512
    %vm46 = vmand %vm44, %vm45
    %47 = vst.msk [vmem:[#allocation7] sm:$0xf] %vm46, %v42
    // Predicated region
    $region18: #{tpu_custom_call.1} parent=1 // pred_check
      _
    $region19: #{tpu_custom_call.1} parent=1 // pred_check_branch
      %49 = sbr.rel (0) target = $region21
    $region20: #{tpu_custom_call.1} parent=1 // pred_region
      %51 = vsyncadd [#allocation4], 0
      %s53 = sshll.u32 [#allocation7], 4
      %s54 = int_to_ptr.vmem [resolvable:$true] %s53
      %s55 = sshll.u32 %s2, 4
      %s56 = int_to_ptr.hbm [resolvable:$true] %s55
      %58 = dma.vmem_to_hbm [thread:$0]  %s54, 64, %s56, [#allocation4]
    $region21: #{tpu_custom_call.1} parent=1 // pred_fallthru
      _
    // Predicated region
    $region22: #{tpu_custom_call.1} parent=1 // pred_check
      _
    $region23: #{tpu_custom_call.1} parent=1 // pred_check_branch
      %60 = sbr.rel (0) target = $region25
    $region24: #{tpu_custom_call.1} parent=1 // pred_region
      %62 = dma.done [#allocation4], 64
    $region25: #{tpu_custom_call.1} parent=1 // pred_fallthru
      _
    %63 = vsyncpa [#allocation3], 1
    %64 = vsyncpa [#allocation6], 1
    %65 = vsyncpa [#allocation4], 1

</llo_original>
